<compile_context>
chip_gen: v5e
topology: v5e:2x2
jax: 0.10.0
libtpu: 0.0.40
codegen_flags: <defaults>
</compile_context>

<pallas_src>
import jax
import jax.numpy as jnp
from jax.experimental import pallas as pl
from jax.experimental.pallas import tpu as pltpu


# ---------------- helpers ----------------

def _apply_act(y, act):
    if act == "leaky_relu":
        return jnp.where(y > 0, y, 0.01 * y)       # PyTorch default slope 0.01
    if act == "sigmoid":
        return jax.nn.sigmoid(y)
    return y


def _choose_tn(batch, n, tn_max=2048, tn_min=256, min_steps=4):
    """Largest power-of-two lane tile that keeps enough grid steps to pipeline
    and shard across the two v7x TensorCores, without exceeding the padded N."""
    n128 = pl.cdiv(n, 128) * 128
    tn = tn_max
    while tn > tn_min and (tn > n128 or batch * pl.cdiv(n, tn) < min_steps):
        tn //= 2
    return tn


# ---------------- fused MLP kernel ----------------

def _build_fused_kernel(layer_meta, has_tmpy, share_tmpy):
    """layer_meta: list of (is_residual, act) per layer.

    Kernel refs layout: (y_ref, [tmpy_ref], W/B refs per layer..., out_ref)
    For residual layers the weight is pre-split into (W_y, W_t, b); otherwise (W, b).
    """
    def kernel(*refs):
        y_ref = refs[0]
        o_ref = refs[-1]
        y = y_ref[...]
        off = 1
        tmpy = None
        if has_tmpy:
            if share_tmpy:
                tmpy = y                      # residual skip == original input tile
            else:
                tmpy = refs[1][...]
                off = 2
        w_refs = refs[off:-1]

        idx = 0
        for is_res, act in layer_meta:
            if is_res:
                wy = w_refs[idx][...]
                wt = w_refs[idx + 1][...]
                b = w_refs[idx + 2][...]
                idx += 3
                acc = jnp.dot(wy, y.astype(wy.dtype),
                              preferred_element_type=jnp.float32)
                acc = acc + jnp.dot(wt, tmpy.astype(wt.dtype),
                                    preferred_element_type=jnp.float32)
            else:
                w = w_refs[idx][...]
                b = w_refs[idx + 1][...]
                idx += 2
                acc = jnp.dot(w, y.astype(w.dtype),
                              preferred_element_type=jnp.float32)
            acc = acc + b                     # bias kept in f32
            y = _apply_act(acc, act)          # f32 epilogue (v5e-safe)
        o_ref[...] = y.astype(o_ref.dtype)
    return kernel


def _fused_mlp_segment(y_in, tmpy, weights, biases, residual_flags, acts, *,
                       share_tmpy, compute_dtype=jnp.float32, tn=None):
    """Run a stack of 1x1-conv layers fully fused in one pallas_call.

    y_in : [B, Cy, N]   starting activation
    tmpy : [B, C0, N]   residual-skip input (ignored if no layer is residual)
    weights[i]: [C_out_i, C_in_i]  (C_in includes +C0 for residual layers)
    biases[i] : [C_out_i]
    Returns [B, C_last, N] in float32.
    """
    B, Cy, N = y_in.shape
    need_tmpy = any(residual_flags)
    C0 = tmpy.shape[1] if need_tmpy else 0
    c_last = weights[-1].shape[0]
    itemsize = jnp.dtype(compute_dtype).itemsize

    if tn is None:
        tn = _choose_tn(B, N)
    n_pad = pl.cdiv(N, tn) * tn

    def pad_and_cast(x):
        x = x.astype(compute_dtype)
        if n_pad != N:
            x = jnp.pad(x, ((0, 0), (0, 0), (0, n_pad - N)))
        return x

    inputs = [pad_and_cast(y_in)]
    in_specs = [pl.BlockSpec((pl.Squeezed(), Cy, tn),
                             lambda bi, ni: (bi, 0, ni))]
    if need_tmpy and not share_tmpy:
        inputs.append(pad_and_cast(tmpy))
        in_specs.append(pl.BlockSpec((pl.Squeezed(), C0, tn),
                                     lambda bi, ni: (bi, 0, ni)))

    layer_meta = []
    cur_c = Cy
    w_bytes = 0
    for w, b, is_res, act in zip(weights, biases, residual_flags, acts):
        c_out = w.shape[0]
        if is_res:
            assert w.shape[1] == cur_c + C0
            parts = [w[:, :cur_c], w[:, cur_c:]]   # fused concat: W = [W_y | W_t]
        else:
            assert w.shape[1] == cur_c
            parts = [w]
        for p in parts:
            p = p.astype(compute_dtype)
            inputs.append(p)
            in_specs.append(pl.BlockSpec(p.shape, lambda bi, ni: (0, 0)))
            w_bytes += p.size * itemsize
        b2 = b.reshape(c_out, 1).astype(jnp.float32)
        inputs.append(b2)
        in_specs.append(pl.BlockSpec(b2.shape, lambda bi, ni: (0, 0)))
        w_bytes += b2.size * 4
        layer_meta.append((is_res, act))
        cur_c = c_out

    # Explicit VMEM budget: double-buffered activation tiles + resident weights
    # + f32 intermediates (spill headroom), clamped to v7x's 64 MiB scoped VMEM.
    in_tile = (Cy + (C0 if (need_tmpy and not share_tmpy) else 0)) * tn * itemsize
    out_tile = c_last * tn * 4
    inter = sum(w.shape[0] for w in weights) * tn * 4
    vmem_bytes = 2 * in_tile + 2 * out_tile + 2 * w_bytes + inter + (4 << 20)
    vmem_bytes = int(min(max(vmem_bytes, 16 << 20), 64 << 20))

    out = pl.pallas_call(
        _build_fused_kernel(layer_meta, need_tmpy, share_tmpy),
        out_shape=jax.ShapeDtypeStruct((B, c_last, n_pad), jnp.float32),
        grid=(B, n_pad // tn),
        in_specs=in_specs,
        out_specs=pl.BlockSpec((pl.Squeezed(), c_last, tn),
                               lambda bi, ni: (bi, 0, ni)),
        compiler_params=pltpu.CompilerParams(
            dimension_semantics=("parallel", "parallel"),
            vmem_limit_bytes=vmem_bytes),
    )(*inputs)

    if n_pad != N:
        out = out[:, :, :N]
    return out


# ---------------- SurfaceClassifier forward ----------------

def surface_classifier_forward(feature, weights, biases, *, num_views=1,
                               no_residual=True, last_op=None,
                               compute_dtype=jnp.float32, tn=None):
    """feature: [B, C0, N] -> [B, C_last, N], matching the PyTorch forward."""
    n_layers = len(weights)
    residual = [(not no_residual) and (i != 0) for i in range(n_layers)]
    acts = []
    for i in range(n_layers):
        if i != n_layers - 1:
            acts.append("leaky_relu")
        elif last_op == "sigmoid":
            acts.append("sigmoid")
        else:
            acts.append(None)

    if num_views <= 1:
        # Single fused kernel over the entire MLP.
        return _fused_mlp_segment(
            feature, feature, weights, biases, residual, acts,
            share_tmpy=True, compute_dtype=compute_dtype, tn=tn)

    # Multi-view: the view-mean at layer n_layers//2 mixes batch groups, which a
    # per-tile kernel cannot express -> split into two fused segments around it.
    mid = n_layers // 2
    acts_a = list(acts[:mid + 1])
    apply_last_op_after_mean = False
    if mid == n_layers - 1 and last_op == "sigmoid":
        acts_a[-1] = None                     # last_op applies after the mean
        apply_last_op_after_mean = True

    y = _fused_mlp_segment(
        feature, feature, weights[:mid + 1], biases[:mid + 1],
        residual[:mid + 1], acts_a,
        share_tmpy=True, compute_dtype=compute_dtype, tn=tn)

    # view-mean glue in plain JAX (tiny, not on the hot path)
    B, C, N = y.shape
    y = y.reshape(-1, num_views, C, N).mean(axis=1)
    Bf, Cf, Nf = feature.shape
    tmpy = feature.reshape(-1, num_views, Cf, Nf).mean(axis=1)

    if mid + 1 < n_layers:
        y = _fused_mlp_segment(
            y, tmpy, weights[mid + 1:], biases[mid + 1:],
            residual[mid + 1:], acts[mid + 1:],
            share_tmpy=False, compute_dtype=compute_dtype, tn=tn)
    elif apply_last_op_after_mean:
        y = jax.nn.sigmoid(y)
    return y


# ---------------- pure-JAX reference for verification ----------------

def _ref_forward(feature, weights, biases, *, num_views=1, no_residual=True,
                 last_op=None):
    n_layers = len(weights)
    y = feature
    tmpy = feature
    for i in range(n_layers):
        inp = y if (no_residual or i == 0) else jnp.concatenate([y, tmpy], axis=1)
        y = jnp.einsum("oc,bcn->bon", weights[i], inp) + biases[i][None, :, None]
        if i != n_layers - 1:
            y = jnp.where(y > 0, y, 0.01 * y)
        if num_views > 1 and i == n_layers // 2:
            B, C, N = y.shape
            y = y.reshape(-1, num_views, C, N).mean(axis=1)
            Bf, Cf, Nf = feature.shape
            tmpy = feature.reshape(-1, num_views, Cf, Nf).mean(axis=1)
    if last_op == "sigmoid":
        y = jax.nn.sigmoid(y)
    return y


# ---------------- deterministic parameter init (PyTorch-like) ----------------

def init_params(key, filter_channels, no_residual):
    weights, biases = [], []
    for l in range(len(filter_channels) - 1):
        c_in = filter_channels[l]
        if (not no_residual) and l != 0:
            c_in = filter_channels[l] + filter_channels[0]
        c_out = filter_channels[l + 1]
        key, kw, kb = jax.random.split(key, 3)
        bound = 1.0 / jnp.sqrt(c_in)
        weights.append(jax.random.uniform(kw, (c_out, c_in), jnp.float32,
                                          minval=-bound, maxval=bound))
        biases.append(jax.random.uniform(kb, (c_out,), jnp.float32,
                                         minval=-bound, maxval=bound))
    return weights, biases


if __name__ == "__main__":
    key = jax.random.PRNGKey(0)

    # ---- Test 1: PIFu-style residual MLP, single view, f32 (tight check) ----
    filter_channels = [16, 32, 32, 16, 1]
    B, N = 2, 256
    key, kx, kp = jax.random.split(key, 3)
    feature = jax.random.normal(kx, (B, filter_channels[0], N), jnp.float32)
    weights, biases = init_params(kp, filter_channels, no_residual=False)

    out = surface_classifier_forward(
        feature, weights, biases, num_views=1, no_residual=False,
        last_op="sigmoid")
    out = jax.block_until_ready(out)
    ref = _ref_forward(feature, weights, biases, num_views=1,
                       no_residual=False, last_op="sigmoid")
    assert out.shape == (B, 1, N)
    assert jnp.allclose(out, ref, atol=1e-5, rtol=1e-5)

    # ---- Test 2: same model, bf16 MXU inputs (halves HBM/VMEM traffic) ----
    out_bf16 = surface_classifier_forward(
        feature, weights, biases, num_views=1, no_residual=False,
        last_op="sigmoid", compute_dtype=jnp.bfloat16)
    out_bf16 = jax.block_until_ready(out_bf16)
    assert jnp.allclose(out_bf16, ref, atol=3e-2, rtol=3e-2)

    # ---- Test 3: multi-view + residual + N not a multiple of the tile ----
    num_views = 2
    B3, N3 = 4, 200
    key, kx3, kp3 = jax.random.split(key, 3)
    feature3 = jax.random.normal(kx3, (B3, filter_channels[0], N3), jnp.float32)
    weights3, biases3 = init_params(kp3, filter_channels, no_residual=False)
    out3 = surface_classifier_forward(
        feature3, weights3, biases3, num_views=num_views, no_residual=False,
        last_op="sigmoid")
    out3 = jax.block_until_ready(out3)
    ref3 = _ref_forward(feature3, weights3, biases3, num_views=num_views,
                        no_residual=False, last_op="sigmoid")
    assert out3.shape == (B3 // num_views, 1, N3)
    assert jnp.allclose(out3, ref3, atol=1e-5, rtol=1e-5)

    # ---- Test 4: no-residual config, no last_op ----
    fc4 = [8, 16, 8]
    B4, N4 = 2, 384
    key, kx4, kp4 = jax.random.split(key, 3)
    feature4 = jax.random.normal(kx4, (B4, fc4[0], N4), jnp.float32)
    weights4, biases4 = init_params(kp4, fc4, no_residual=True)
    out4 = surface_classifier_forward(
        feature4, weights4, biases4, num_views=1, no_residual=True,
        last_op=None)
    out4 = jax.block_until_ready(out4)
    ref4 = _ref_forward(feature4, weights4, biases4, num_views=1,
                        no_residual=True, last_op=None)
    assert jnp.allclose(out4, ref4, atol=1e-5, rtol=1e-5)

    print("KERNEL_OK")
</pallas_src>

<mosaic_0001>
module attributes {stable_mosaic.version = 11 : i64} {
  func.func @kernel(%arg0: i32, %arg1: i32, %arg2: memref<1x16x256xf32, #tpu.memory_space<vmem>>, %arg3: memref<32x16xf32, #tpu.memory_space<vmem>>, %arg4: memref<32x1xf32, #tpu.memory_space<vmem>>, %arg5: memref<32x32xf32, #tpu.memory_space<vmem>>, %arg6: memref<32x16xf32, #tpu.memory_space<vmem>>, %arg7: memref<32x1xf32, #tpu.memory_space<vmem>>, %arg8: memref<16x32xf32, #tpu.memory_space<vmem>>, %arg9: memref<16x16xf32, #tpu.memory_space<vmem>>, %arg10: memref<16x1xf32, #tpu.memory_space<vmem>>, %arg11: memref<1x16xf32, #tpu.memory_space<vmem>>, %arg12: memref<1x16xf32, #tpu.memory_space<vmem>>, %arg13: memref<1x1xf32, #tpu.memory_space<vmem>>, %arg14: memref<1x1x256xf32, #tpu.memory_space<vmem>>) attributes {dimension_semantics = [#tpu.dimension_semantics<parallel>, #tpu.dimension_semantics<parallel>], iteration_bounds = array<i64: 2, 1>, scalar_prefetch = 0 : i64, scratch_operands = 0 : i64, tpu.core_type = #tpu.core_type<tc>, window_params = [{transform_indices = @transform_0, window_bounds = array<i64: 1, 16, 256>}, {pipeline_mode = #tpu.pipeline_mode<synchronous>, transform_indices = @transform_1, window_bounds = array<i64: 32, 16>}, {pipeline_mode = #tpu.pipeline_mode<synchronous>, transform_indices = @transform_2, window_bounds = array<i64: 32, 1>}, {pipeline_mode = #tpu.pipeline_mode<synchronous>, transform_indices = @transform_3, window_bounds = array<i64: 32, 32>}, {pipeline_mode = #tpu.pipeline_mode<synchronous>, transform_indices = @transform_4, window_bounds = array<i64: 32, 16>}, {pipeline_mode = #tpu.pipeline_mode<synchronous>, transform_indices = @transform_5, window_bounds = array<i64: 32, 1>}, {pipeline_mode = #tpu.pipeline_mode<synchronous>, transform_indices = @transform_6, window_bounds = array<i64: 16, 32>}, {pipeline_mode = #tpu.pipeline_mode<synchronous>, transform_indices = @transform_7, window_bounds = array<i64: 16, 16>}, {pipeline_mode = #tpu.pipeline_mode<synchronous>, transform_indices = @transform_8, window_bounds = array<i64: 16, 1>}, {pipeline_mode = #tpu.pipeline_mode<synchronous>, transform_indices = @transform_9, window_bounds = array<i64: 1, 16>}, {pipeline_mode = #tpu.pipeline_mode<synchronous>, transform_indices = @transform_10, window_bounds = array<i64: 1, 16>}, {pipeline_mode = #tpu.pipeline_mode<synchronous>, transform_indices = @transform_11, window_bounds = array<i64: 1, 1>}, {transform_indices = @transform_12, window_bounds = array<i64: 1, 1, 256>}]} {
    %c0 = arith.constant 0 : index
    %c0_0 = arith.constant 0 : index
    %c0_1 = arith.constant 0 : index
    %0 = vector.load %arg2[%c0, %c0_0, %c0_1] : memref<1x16x256xf32, #tpu.memory_space<vmem>>, vector<1x16x256xf32>
    %1 = vector.shape_cast %0 : vector<1x16x256xf32> to vector<16x256xf32>
    %c0_2 = arith.constant 0 : index
    %c0_3 = arith.constant 0 : index
    %2 = vector.load %arg3[%c0_2, %c0_3] : memref<32x16xf32, #tpu.memory_space<vmem>>, vector<32x16xf32>
    %c0_4 = arith.constant 0 : index
    %c0_5 = arith.constant 0 : index
    %3 = vector.load %arg4[%c0_4, %c0_5] : memref<32x1xf32, #tpu.memory_space<vmem>>, vector<32x1xf32>
    %cst = arith.constant dense<0.000000e+00> : vector<32x256xf32>
    %4 = tpu.matmul %2, %1, %cst {dimension_numbers = #tpu.dot_dimension_numbers<[1], [0], [0], [1], [0, 0, 1, 1], [], []>} : vector<32x16xf32>, vector<16x256xf32>, vector<32x256xf32> -> vector<32x256xf32>
    %5 = vector.broadcast %3 : vector<32x1xf32> to vector<32x256xf32>
    %6 = arith.addf %4, %5 : vector<32x256xf32>
    %cst_6 = arith.constant 0.000000e+00 : f32
    %7 = vector.broadcast %cst_6 : f32 to vector<32x256xf32>
    %8 = arith.cmpf ogt, %6, %7 : vector<32x256xf32>
    %cst_7 = arith.constant 0.00999999977 : f32
    %9 = vector.broadcast %cst_7 : f32 to vector<32x256xf32>
    %10 = arith.mulf %9, %6 : vector<32x256xf32>
    %11 = arith.select %8, %6, %10 : vector<32x256xi1>, vector<32x256xf32>
    %c0_8 = arith.constant 0 : index
    %c0_9 = arith.constant 0 : index
    %12 = vector.load %arg5[%c0_8, %c0_9] : memref<32x32xf32, #tpu.memory_space<vmem>>, vector<32x32xf32>
    %c0_10 = arith.constant 0 : index
    %c0_11 = arith.constant 0 : index
    %13 = vector.load %arg6[%c0_10, %c0_11] : memref<32x16xf32, #tpu.memory_space<vmem>>, vector<32x16xf32>
    %c0_12 = arith.constant 0 : index
    %c0_13 = arith.constant 0 : index
    %14 = vector.load %arg7[%c0_12, %c0_13] : memref<32x1xf32, #tpu.memory_space<vmem>>, vector<32x1xf32>
    %cst_14 = arith.constant dense<0.000000e+00> : vector<32x256xf32>
    %15 = tpu.matmul %12, %11, %cst_14 {dimension_numbers = #tpu.dot_dimension_numbers<[1], [0], [0], [1], [0, 0, 1, 1], [], []>} : vector<32x32xf32>, vector<32x256xf32>, vector<32x256xf32> -> vector<32x256xf32>
    %cst_15 = arith.constant dense<0.000000e+00> : vector<32x256xf32>
    %16 = tpu.matmul %13, %1, %cst_15 {dimension_numbers = #tpu.dot_dimension_numbers<[1], [0], [0], [1], [0, 0, 1, 1], [], []>} : vector<32x16xf32>, vector<16x256xf32>, vector<32x256xf32> -> vector<32x256xf32>
    %17 = arith.addf %15, %16 : vector<32x256xf32>
    %18 = vector.broadcast %14 : vector<32x1xf32> to vector<32x256xf32>
    %19 = arith.addf %17, %18 : vector<32x256xf32>
    %cst_16 = arith.constant 0.000000e+00 : f32
    %20 = vector.broadcast %cst_16 : f32 to vector<32x256xf32>
    %21 = arith.cmpf ogt, %19, %20 : vector<32x256xf32>
    %cst_17 = arith.constant 0.00999999977 : f32
    %22 = vector.broadcast %cst_17 : f32 to vector<32x256xf32>
    %23 = arith.mulf %22, %19 : vector<32x256xf32>
    %24 = arith.select %21, %19, %23 : vector<32x256xi1>, vector<32x256xf32>
    %c0_18 = arith.constant 0 : index
    %c0_19 = arith.constant 0 : index
    %25 = vector.load %arg8[%c0_18, %c0_19] : memref<16x32xf32, #tpu.memory_space<vmem>>, vector<16x32xf32>
    %c0_20 = arith.constant 0 : index
    %c0_21 = arith.constant 0 : index
    %26 = vector.load %arg9[%c0_20, %c0_21] : memref<16x16xf32, #tpu.memory_space<vmem>>, vector<16x16xf32>
    %c0_22 = arith.constant 0 : index
    %c0_23 = arith.constant 0 : index
    %27 = vector.load %arg10[%c0_22, %c0_23] : memref<16x1xf32, #tpu.memory_space<vmem>>, vector<16x1xf32>
    %cst_24 = arith.constant dense<0.000000e+00> : vector<16x256xf32>
    %28 = tpu.matmul %25, %24, %cst_24 {dimension_numbers = #tpu.dot_dimension_numbers<[1], [0], [0], [1], [0, 0, 1, 1], [], []>} : vector<16x32xf32>, vector<32x256xf32>, vector<16x256xf32> -> vector<16x256xf32>
    %cst_25 = arith.constant dense<0.000000e+00> : vector<16x256xf32>
    %29 = tpu.matmul %26, %1, %cst_25 {dimension_numbers = #tpu.dot_dimension_numbers<[1], [0], [0], [1], [0, 0, 1, 1], [], []>} : vector<16x16xf32>, vector<16x256xf32>, vector<16x256xf32> -> vector<16x256xf32>
    %30 = arith.addf %28, %29 : vector<16x256xf32>
    %31 = vector.broadcast %27 : vector<16x1xf32> to vector<16x256xf32>
    %32 = arith.addf %30, %31 : vector<16x256xf32>
    %cst_26 = arith.constant 0.000000e+00 : f32
    %33 = vector.broadcast %cst_26 : f32 to vector<16x256xf32>
    %34 = arith.cmpf ogt, %32, %33 : vector<16x256xf32>
    %cst_27 = arith.constant 0.00999999977 : f32
    %35 = vector.broadcast %cst_27 : f32 to vector<16x256xf32>
    %36 = arith.mulf %35, %32 : vector<16x256xf32>
    %37 = arith.select %34, %32, %36 : vector<16x256xi1>, vector<16x256xf32>
    %c0_28 = arith.constant 0 : index
    %c0_29 = arith.constant 0 : index
    %38 = vector.load %arg11[%c0_28, %c0_29] : memref<1x16xf32, #tpu.memory_space<vmem>>, vector<1x16xf32>
    %c0_30 = arith.constant 0 : index
    %c0_31 = arith.constant 0 : index
    %39 = vector.load %arg12[%c0_30, %c0_31] : memref<1x16xf32, #tpu.memory_space<vmem>>, vector<1x16xf32>
    %c0_32 = arith.constant 0 : index
    %c0_33 = arith.constant 0 : index
    %40 = vector.load %arg13[%c0_32, %c0_33] : memref<1x1xf32, #tpu.memory_space<vmem>>, vector<1x1xf32>
    %cst_34 = arith.constant dense<0.000000e+00> : vector<1x256xf32>
    %41 = tpu.matmul %38, %37, %cst_34 {dimension_numbers = #tpu.dot_dimension_numbers<[1], [0], [0], [1], [0, 0, 1, 1], [], []>} : vector<1x16xf32>, vector<16x256xf32>, vector<1x256xf32> -> vector<1x256xf32>
    %cst_35 = arith.constant dense<0.000000e+00> : vector<1x256xf32>
    %42 = tpu.matmul %39, %1, %cst_35 {dimension_numbers = #tpu.dot_dimension_numbers<[1], [0], [0], [1], [0, 0, 1, 1], [], []>} : vector<1x16xf32>, vector<16x256xf32>, vector<1x256xf32> -> vector<1x256xf32>
    %43 = arith.addf %41, %42 : vector<1x256xf32>
    %44 = vector.broadcast %40 : vector<1x1xf32> to vector<1x256xf32>
    %45 = arith.addf %43, %44 : vector<1x256xf32>
    %46 = arith.negf %45 : vector<1x256xf32>
    %47 = math.exp %46 : vector<1x256xf32>
    %cst_36 = arith.constant 1.000000e+00 : f32
    %48 = vector.broadcast %cst_36 : f32 to vector<1x256xf32>
    %49 = arith.addf %48, %47 : vector<1x256xf32>
    %50 = arith.divf %48, %49 : vector<1x256xf32>
    %c0_37 = arith.constant 0 : index
    %c0_38 = arith.constant 0 : index
    %c0_39 = arith.constant 0 : index
    %51 = vector.load %arg14[%c0_37, %c0_38, %c0_39] : memref<1x1x256xf32, #tpu.memory_space<vmem>>, vector<1x1x256xf32>
    %52 = vector.shape_cast %51 : vector<1x1x256xf32> to vector<1x256xf32>
    %53 = vector.shape_cast %50 : vector<1x256xf32> to vector<1x1x256xf32>
    tpu.vector_store %arg14[%c0_37, %c0_38, %c0_39], %53 {strides = array<i32>} : memref<1x1x256xf32, #tpu.memory_space<vmem>>, vector<1x1x256xf32>,
    return
  }
  func.func @transform_0(%arg0: i32, %arg1: i32) -> (i32, i32, i32) {
    %c0_i32 = arith.constant 0 : i32
    %c0_i32_0 = arith.constant 0 : i32
    return %arg0, %c0_i32, %arg1 : i32, i32, i32
  }
  func.func @transform_1(%arg0: i32, %arg1: i32) -> (i32, i32) {
    %c0_i32 = arith.constant 0 : i32
    %c0_i32_0 = arith.constant 0 : i32
    %c0_i32_1 = arith.constant 0 : i32
    return %c0_i32, %c0_i32_0 : i32, i32
  }
  func.func @transform_2(%arg0: i32, %arg1: i32) -> (i32, i32) {
    %c0_i32 = arith.constant 0 : i32
    %c0_i32_0 = arith.constant 0 : i32
    %c0_i32_1 = arith.constant 0 : i32
    return %c0_i32, %c0_i32_0 : i32, i32
  }
  func.func @transform_3(%arg0: i32, %arg1: i32) -> (i32, i32) {
    %c0_i32 = arith.constant 0 : i32
    %c0_i32_0 = arith.constant 0 : i32
    %c0_i32_1 = arith.constant 0 : i32
    return %c0_i32, %c0_i32_0 : i32, i32
  }
  func.func @transform_4(%arg0: i32, %arg1: i32) -> (i32, i32) {
    %c0_i32 = arith.constant 0 : i32
    %c0_i32_0 = arith.constant 0 : i32
    %c0_i32_1 = arith.constant 0 : i32
    return %c0_i32, %c0_i32_0 : i32, i32
  }
  func.func @transform_5(%arg0: i32, %arg1: i32) -> (i32, i32) {
    %c0_i32 = arith.constant 0 : i32
    %c0_i32_0 = arith.constant 0 : i32
    %c0_i32_1 = arith.constant 0 : i32
    return %c0_i32, %c0_i32_0 : i32, i32
  }
  func.func @transform_6(%arg0: i32, %arg1: i32) -> (i32, i32) {
    %c0_i32 = arith.constant 0 : i32
    %c0_i32_0 = arith.constant 0 : i32
    %c0_i32_1 = arith.constant 0 : i32
    return %c0_i32, %c0_i32_0 : i32, i32
  }
  func.func @transform_7(%arg0: i32, %arg1: i32) -> (i32, i32) {
    %c0_i32 = arith.constant 0 : i32
    %c0_i32_0 = arith.constant 0 : i32
    %c0_i32_1 = arith.constant 0 : i32
    return %c0_i32, %c0_i32_0 : i32, i32
  }
  func.func @transform_8(%arg0: i32, %arg1: i32) -> (i32, i32) {
    %c0_i32 = arith.constant 0 : i32
    %c0_i32_0 = arith.constant 0 : i32
    %c0_i32_1 = arith.constant 0 : i32
    return %c0_i32, %c0_i32_0 : i32, i32
  }
  func.func @transform_9(%arg0: i32, %arg1: i32) -> (i32, i32) {
    %c0_i32 = arith.constant 0 : i32
    %c0_i32_0 = arith.constant 0 : i32
    %c0_i32_1 = arith.constant 0 : i32
    return %c0_i32, %c0_i32_0 : i32, i32
  }
  func.func @transform_10(%arg0: i32, %arg1: i32) -> (i32, i32) {
    %c0_i32 = arith.constant 0 : i32
    %c0_i32_0 = arith.constant 0 : i32
    %c0_i32_1 = arith.constant 0 : i32
    return %c0_i32, %c0_i32_0 : i32, i32
  }
  func.func @transform_11(%arg0: i32, %arg1: i32) -> (i32, i32) {
    %c0_i32 = arith.constant 0 : i32
    %c0_i32_0 = arith.constant 0 : i32
    %c0_i32_1 = arith.constant 0 : i32
    return %c0_i32, %c0_i32_0 : i32, i32
  }
  func.func @transform_12(%arg0: i32, %arg1: i32) -> (i32, i32, i32) {
    %c0_i32 = arith.constant 0 : i32
    %c0_i32_0 = arith.constant 0 : i32
    return %arg0, %c0_i32, %arg1 : i32, i32, i32
  }
}

</mosaic_0001>

<llo_original>
// kernel: tpu_custom_call.1
$region0: #{tpu_custom_call.1}
  #allocation0 [shape = 'u32[]', space=smem, size = 0x4, offset = 0x4, fixed_abs, tag = 'smem constant byte address 0x4 - core index']
  #allocation1 [shape = 'u32[72,128]{1,0:T(1,128)}', space=vmem, size = 0x9000, scoped, tag = 'internal scratch']
  #allocation2 [shape = 'f32[1,1]{1,0:T(1,128)S(1)}', space=vmem, size = 0x200, scoped, tag = 'scoped memory for tpu_custom_call.1']
  %s0 = inlined_call_operand.vmem [shape: f32[2,16,256], index: 0, kind: input, shape index: {}]
  %s1 = inlined_call_operand.vmem [shape: f32[32,16], index: 1, kind: input, shape index: {}]
  %s2 = inlined_call_operand.vmem [shape: f32[32,1], index: 2, kind: input, shape index: {}]
  %s3 = inlined_call_operand.vmem [shape: f32[32,32], index: 3, kind: input, shape index: {}]
  %s4 = inlined_call_operand.vmem [shape: f32[32,16], index: 4, kind: input, shape index: {}]
  %s5 = inlined_call_operand.vmem [shape: f32[32,1], index: 5, kind: input, shape index: {}]
  %s6 = inlined_call_operand.vmem [shape: f32[16,32], index: 6, kind: input, shape index: {}]
  %s7 = inlined_call_operand.vmem [shape: f32[16,16], index: 7, kind: input, shape index: {}]
  %s8 = inlined_call_operand.vmem [shape: f32[16,1], index: 8, kind: input, shape index: {}]
  %s9 = inlined_call_operand.vmem [shape: f32[1,16], index: 9, kind: input, shape index: {}]
  %s10 = inlined_call_operand.vmem [shape: f32[1,16], index: 10, kind: input, shape index: {}]
  %s11 = inlined_call_operand.<no memory space> [shape: f32[1,1], index: 11, kind: input, shape index: {}]
  %s12 = inlined_call_operand.hbm [shape: f32[2,1,256], index: 12, kind: output, shape index: {}]
  %s13 = sld [smem:[#allocation0]]
  $region81: #{tpu_custom_call.1} parent=0
    _
  %s15 = ssub.s32 1, %s13
  %s16 = scalar_select 0, %s15, %s13
  %v17 = vstv %s11
  %18 = vst [vmem:[#allocation2] sm:$0x1] %v17
  $region1: #{tpu_custom_call.1} parent=0
    #allocation3 [shape = 'u8[2048]{0}', space=vmem, size = 0x800, scoped, tag = 'output window, operand 0']
    #allocation4 [shape = 's32[2]{0}', space=sflag, size = 0x8, scoped, tag = 'scoped memory for tpu_custom_call.1']
    %19 = vsyncpa [#allocation4], 0
    %s20 = scalar_lea.sflag [#allocation4], 1
    %21 = vsyncpa %s20, 0
    loop: start=0, step=1, limit=4
    $region2: #{tpu_custom_call.1} parent=1 // loop_pre_header
      _
    $region3: #{tpu_custom_call.1} parent=1 // loop_header
      %s23 = sphi 0, %s27
      %p24 = scmp.ge.s32.totalorder %s23, 4
      %s30 = sphi 0, %s42
      %s31 = sphi 0, %s38
      %s32 = sphi 0, %s30
      %s33 = sphi 0, %s31
      %s34 = sphi 0, %s32
      %s35 = sphi 0, %s33
      %s47 = sphi 0, %s49
      %s50 = sphi 0, %s47
      %s51 = sphi 0, %s50
      %s67 = sphi 0, %s51
      %s71 = sphi 0, %s71
      %s73 = sphi 0, %s71
      %s74 = sphi 0, %s73
      %s88 = sphi 0, %s74
      %s92 = sphi 0, %s92
      %s94 = sphi 0, %s92
      %s95 = sphi 0, %s94
      %s109 = sphi 0, %s95
      %s113 = sphi 0, %s113
      %s115 = sphi 0, %s113
      %s116 = sphi 0, %s115
      %s130 = sphi 0, %s116
      %s134 = sphi 0, %s134
      %s136 = sphi 0, %s134
      %s137 = sphi 0, %s136
      %s151 = sphi 0, %s137
      %s155 = sphi 0, %s155
      %s157 = sphi 0, %s155
      %s158 = sphi 0, %s157
      %s172 = sphi 0, %s158
      %s176 = sphi 0, %s176
      %s178 = sphi 0, %s176
      %s179 = sphi 0, %s178
      %s193 = sphi 0, %s179
      %s197 = sphi 0, %s197
      %s199 = sphi 0, %s197
      %s200 = sphi 0, %s199
      %s214 = sphi 0, %s200
      %s218 = sphi 0, %s218
      %s220 = sphi 0, %s218
      %s221 = sphi 0, %s220
      %s235 = sphi 0, %s221
      %s239 = sphi 0, %s239
      %s241 = sphi 0, %s239
      %s242 = sphi 0, %s241
      %s256 = sphi 0, %s242
      %s260 = sphi 0, %s260
      %s262 = sphi 0, %s260
      %s263 = sphi 0, %s262
      %s277 = sphi 0, %s263
      %s281 = sphi 0, %s281
      %s283 = sphi 0, %s281
      %s284 = sphi 0, %s283
      %s298 = sphi 0, %s284
      %s306 = sphi 0, %s308
      %s309 = sphi 0, %s306
      %s310 = sphi 0, %s309
      %s326 = sphi 0, %s310
    $region4: #{tpu_custom_call.1} parent=1 // loop_header_branch
      %26 = sbr.rel (%p24) target = $region8
    $region5: #{tpu_custom_call.1} parent=1 // loop_body
      %s28 = ssub.s32 %s23, 1
      %s29 = ssub.s32 %s23, 2
      %s36 = sadd.s32 1, %s31
      %p37 = scmp.ge.s32.totalorder %s36, 1
      %s38 = scalar_select %p37, 0, %s36
      %s39 = sadd.s32 1, %s30
      %s40 = scalar_select %p37, %s39, %s30
      %p41 = scmp.ge.s32.totalorder %s40, 2
      %s42 = scalar_select %p41, 0, %s40
      %s43 = ssub.s32 %s30, %s42
      %s44 = ssub.s32 %s31, %s38
      %s45 = sor.u32 %s43, %s44
      %p46 = scmp.eq.s32.totalorder %s45, 0
      %s48 = sadd.s32 %s47, 1
      %s49 = scalar_select %p46, %s47, %s48
      %p52 = pneg %p46
      %p53 = scmp.eq.s32.totalorder %s23, 1
      %p54 = por %p52, %p53
      %p55 = scmp.ne.s32.totalorder %s47, %s50
      %p56 = scmp.eq.s32.totalorder %s23, 0
      %p57 = por %p55, %p56
      %p58 = scmp.ne.s32.totalorder %s47, %s50
      %p59 = scmp.eq.s32.totalorder %s28, 1
      %p60 = por %p58, %p59
      %p61 = scmp.ne.s32.totalorder %s50, %s51
      %p62 = scmp.eq.s32.totalorder %s28, 0
      %p63 = por %p61, %p62
      %p64 = scmp.ne.s32.totalorder %s50, %s51
      %p65 = scmp.eq.s32.totalorder %s29, 1
      %p66 = por %p64, %p65
      %p68 = scmp.ne.s32.totalorder %s51, %s67
      %p69 = scmp.eq.s32.totalorder %s29, 0
      %p70 = por %p68, %p69
      %s72 = sadd.s32 %s71, 1
      %p75 = scmp.eq.s32.totalorder %s23, 1
      %p76 = scmp.ne.s32.totalorder %s71, %s73
      %p77 = scmp.eq.s32.totalorder %s23, 0
      %p78 = por %p76, %p77
      %p79 = scmp.ne.s32.totalorder %s71, %s73
      %p80 = scmp.eq.s32.totalorder %s28, 1
      %p81 = por %p79, %p80
      %p82 = scmp.ne.s32.totalorder %s73, %s74
      %p83 = scmp.eq.s32.totalorder %s28, 0
      %p84 = por %p82, %p83
      %p85 = scmp.ne.s32.totalorder %s73, %s74
      %p86 = scmp.eq.s32.totalorder %s29, 1
      %p87 = por %p85, %p86
      %p89 = scmp.ne.s32.totalorder %s74, %s88
      %p90 = scmp.eq.s32.totalorder %s29, 0
      %p91 = por %p89, %p90
      %s93 = sadd.s32 %s92, 1
      %p96 = scmp.eq.s32.totalorder %s23, 1
      %p97 = scmp.ne.s32.totalorder %s92, %s94
      %p98 = scmp.eq.s32.totalorder %s23, 0
      %p99 = por %p97, %p98
      %p100 = scmp.ne.s32.totalorder %s92, %s94
      %p101 = scmp.eq.s32.totalorder %s28, 1
      %p102 = por %p100, %p101
      %p103 = scmp.ne.s32.totalorder %s94, %s95
      %p104 = scmp.eq.s32.totalorder %s28, 0
      %p105 = por %p103, %p104
      %p106 = scmp.ne.s32.totalorder %s94, %s95
      %p107 = scmp.eq.s32.totalorder %s29, 1
      %p108 = por %p106, %p107
      %p110 = scmp.ne.s32.totalorder %s95, %s109
      %p111 = scmp.eq.s32.totalorder %s29, 0
      %p112 = por %p110, %p111
      %s114 = sadd.s32 %s113, 1
      %p117 = scmp.eq.s32.totalorder %s23, 1
      %p118 = scmp.ne.s32.totalorder %s113, %s115
      %p119 = scmp.eq.s32.totalorder %s23, 0
      %p120 = por %p118, %p119
      %p121 = scmp.ne.s32.totalorder %s113, %s115
      %p122 = scmp.eq.s32.totalorder %s28, 1
      %p123 = por %p121, %p122
      %p124 = scmp.ne.s32.totalorder %s115, %s116
      %p125 = scmp.eq.s32.totalorder %s28, 0
      %p126 = por %p124, %p125
      %p127 = scmp.ne.s32.totalorder %s115, %s116
      %p128 = scmp.eq.s32.totalorder %s29, 1
      %p129 = por %p127, %p128
      %p131 = scmp.ne.s32.totalorder %s116, %s130
      %p132 = scmp.eq.s32.totalorder %s29, 0
      %p133 = por %p131, %p132
      %s135 = sadd.s32 %s134, 1
      %p138 = scmp.eq.s32.totalorder %s23, 1
      %p139 = scmp.ne.s32.totalorder %s134, %s136
      %p140 = scmp.eq.s32.totalorder %s23, 0
      %p141 = por %p139, %p140
      %p142 = scmp.ne.s32.totalorder %s134, %s136
      %p143 = scmp.eq.s32.totalorder %s28, 1
      %p144 = por %p142, %p143
      %p145 = scmp.ne.s32.totalorder %s136, %s137
      %p146 = scmp.eq.s32.totalorder %s28, 0
      %p147 = por %p145, %p146
      %p148 = scmp.ne.s32.totalorder %s136, %s137
      %p149 = scmp.eq.s32.totalorder %s29, 1
      %p150 = por %p148, %p149
      %p152 = scmp.ne.s32.totalorder %s137, %s151
      %p153 = scmp.eq.s32.totalorder %s29, 0
      %p154 = por %p152, %p153
      %s156 = sadd.s32 %s155, 1
      %p159 = scmp.eq.s32.totalorder %s23, 1
      %p160 = scmp.ne.s32.totalorder %s155, %s157
      %p161 = scmp.eq.s32.totalorder %s23, 0
      %p162 = por %p160, %p161
      %p163 = scmp.ne.s32.totalorder %s155, %s157
      %p164 = scmp.eq.s32.totalorder %s28, 1
      %p165 = por %p163, %p164
      %p166 = scmp.ne.s32.totalorder %s157, %s158
      %p167 = scmp.eq.s32.totalorder %s28, 0
      %p168 = por %p166, %p167
      %p169 = scmp.ne.s32.totalorder %s157, %s158
      %p170 = scmp.eq.s32.totalorder %s29, 1
      %p171 = por %p169, %p170
      %p173 = scmp.ne.s32.totalorder %s158, %s172
      %p174 = scmp.eq.s32.totalorder %s29, 0
      %p175 = por %p173, %p174
      %s177 = sadd.s32 %s176, 1
      %p180 = scmp.eq.s32.totalorder %s23, 1
      %p181 = scmp.ne.s32.totalorder %s176, %s178
      %p182 = scmp.eq.s32.totalorder %s23, 0
      %p183 = por %p181, %p182
      %p184 = scmp.ne.s32.totalorder %s176, %s178
      %p185 = scmp.eq.s32.totalorder %s28, 1
      %p186 = por %p184, %p185
      %p187 = scmp.ne.s32.totalorder %s178, %s179
      %p188 = scmp.eq.s32.totalorder %s28, 0
      %p189 = por %p187, %p188
      %p190 = scmp.ne.s32.totalorder %s178, %s179
      %p191 = scmp.eq.s32.totalorder %s29, 1
      %p192 = por %p190, %p191
      %p194 = scmp.ne.s32.totalorder %s179, %s193
      %p195 = scmp.eq.s32.totalorder %s29, 0
      %p196 = por %p194, %p195
      %s198 = sadd.s32 %s197, 1
      %p201 = scmp.eq.s32.totalorder %s23, 1
      %p202 = scmp.ne.s32.totalorder %s197, %s199
      %p203 = scmp.eq.s32.totalorder %s23, 0
      %p204 = por %p202, %p203
      %p205 = scmp.ne.s32.totalorder %s197, %s199
      %p206 = scmp.eq.s32.totalorder %s28, 1
      %p207 = por %p205, %p206
      %p208 = scmp.ne.s32.totalorder %s199, %s200
      %p209 = scmp.eq.s32.totalorder %s28, 0
      %p210 = por %p208, %p209
      %p211 = scmp.ne.s32.totalorder %s199, %s200
      %p212 = scmp.eq.s32.totalorder %s29, 1
      %p213 = por %p211, %p212
      %p215 = scmp.ne.s32.totalorder %s200, %s214
      %p216 = scmp.eq.s32.totalorder %s29, 0
      %p217 = por %p215, %p216
      %s219 = sadd.s32 %s218, 1
      %p222 = scmp.eq.s32.totalorder %s23, 1
      %p223 = scmp.ne.s32.totalorder %s218, %s220
      %p224 = scmp.eq.s32.totalorder %s23, 0
      %p225 = por %p223, %p224
      %p226 = scmp.ne.s32.totalorder %s218, %s220
      %p227 = scmp.eq.s32.totalorder %s28, 1
      %p228 = por %p226, %p227
      %p229 = scmp.ne.s32.totalorder %s220, %s221
      %p230 = scmp.eq.s32.totalorder %s28, 0
      %p231 = por %p229, %p230
      %p232 = scmp.ne.s32.totalorder %s220, %s221
      %p233 = scmp.eq.s32.totalorder %s29, 1
      %p234 = por %p232, %p233
      %p236 = scmp.ne.s32.totalorder %s221, %s235
      %p237 = scmp.eq.s32.totalorder %s29, 0
      %p238 = por %p236, %p237
      %s240 = sadd.s32 %s239, 1
      %p243 = scmp.eq.s32.totalorder %s23, 1
      %p244 = scmp.ne.s32.totalorder %s239, %s241
      %p245 = scmp.eq.s32.totalorder %s23, 0
      %p246 = por %p244, %p245
      %p247 = scmp.ne.s32.totalorder %s239, %s241
      %p248 = scmp.eq.s32.totalorder %s28, 1
      %p249 = por %p247, %p248
      %p250 = scmp.ne.s32.totalorder %s241, %s242
      %p251 = scmp.eq.s32.totalorder %s28, 0
      %p252 = por %p250, %p251
      %p253 = scmp.ne.s32.totalorder %s241, %s242
      %p254 = scmp.eq.s32.totalorder %s29, 1
      %p255 = por %p253, %p254
      %p257 = scmp.ne.s32.totalorder %s242, %s256
      %p258 = scmp.eq.s32.totalorder %s29, 0
      %p259 = por %p257, %p258
      %s261 = sadd.s32 %s260, 1
      %p264 = scmp.eq.s32.totalorder %s23, 1
      %p265 = scmp.ne.s32.totalorder %s260, %s262
      %p266 = scmp.eq.s32.totalorder %s23, 0
      %p267 = por %p265, %p266
      %p268 = scmp.ne.s32.totalorder %s260, %s262
      %p269 = scmp.eq.s32.totalorder %s28, 1
      %p270 = por %p268, %p269
      %p271 = scmp.ne.s32.totalorder %s262, %s263
      %p272 = scmp.eq.s32.totalorder %s28, 0
      %p273 = por %p271, %p272
      %p274 = scmp.ne.s32.totalorder %s262, %s263
      %p275 = scmp.eq.s32.totalorder %s29, 1
      %p276 = por %p274, %p275
      %p278 = scmp.ne.s32.totalorder %s263, %s277
      %p279 = scmp.eq.s32.totalorder %s29, 0
      %p280 = por %p278, %p279
      %s282 = sadd.s32 %s281, 1
      %p285 = scmp.eq.s32.totalorder %s23, 1
      %p286 = scmp.ne.s32.totalorder %s281, %s283
      %p287 = scmp.eq.s32.totalorder %s23, 0
      %p288 = por %p286, %p287
      %p289 = scmp.ne.s32.totalorder %s281, %s283
      %p290 = scmp.eq.s32.totalorder %s28, 1
      %p291 = por %p289, %p290
      %p292 = scmp.ne.s32.totalorder %s283, %s284
      %p293 = scmp.eq.s32.totalorder %s28, 0
      %p294 = por %p292, %p293
      %p295 = scmp.ne.s32.totalorder %s283, %s284
      %p296 = scmp.eq.s32.totalorder %s29, 1
      %p297 = por %p295, %p296
      %p299 = scmp.ne.s32.totalorder %s284, %s298
      %p300 = scmp.eq.s32.totalorder %s29, 0
      %p301 = por %p299, %p300
      %s302 = ssub.s32 %s30, %s42
      %s303 = ssub.s32 %s31, %s38
      %s304 = sor.u32 %s302, %s303
      %p305 = scmp.eq.s32.totalorder %s304, 0
      %s307 = sadd.s32 %s306, 1
      %s308 = scalar_select %p305, %s306, %s307
      %p311 = pneg %p305
      %p312 = scmp.eq.s32.totalorder %s23, 1
      %p313 = por %p311, %p312
      %p314 = scmp.ne.s32.totalorder %s306, %s309
      %p315 = scmp.eq.s32.totalorder %s23, 0
      %p316 = por %p314, %p315
      %p317 = scmp.ne.s32.totalorder %s306, %s309
      %p318 = scmp.eq.s32.totalorder %s28, 1
      %p319 = por %p317, %p318
      %p320 = scmp.ne.s32.totalorder %s309, %s310
      %p321 = scmp.eq.s32.totalorder %s28, 0
      %p322 = por %p320, %p321
      %p323 = scmp.ne.s32.totalorder %s309, %s310
      %p324 = scmp.eq.s32.totalorder %s29, 1
      %p325 = por %p323, %p324
      %p327 = scmp.ne.s32.totalorder %s310, %s326
      %p328 = scmp.eq.s32.totalorder %s29, 0
      %p329 = por %p327, %p328
      %p330 = scmp.le.s32.totalorder 1, %s23
      %p331 = scmp.lt.s32.totalorder %s23, 3
      %p332 = pnand %p330, %p331
      %p333 = pneg %p332
      // Predicated region
      $region9: #{tpu_custom_call.1} parent=5 // pred_check
        _
      $region10: #{tpu_custom_call.1} parent=5 // pred_check_branch
        %335 = sbr.rel (%p332) target = $region12
      $region11: #{tpu_custom_call.1} parent=5 // pred_region
        %s336 = ssub.s32 %s23, 1
        // Predicated region
        $region13: #{tpu_custom_call.1} parent=11 // pred_check
          %p337 = pneg %p84
        $region14: #{tpu_custom_call.1} parent=11 // pred_check_branch
          %339 = sbr.rel (%p337) target = $region16
        $region15: #{tpu_custom_call.1} parent=11 // pred_region
          _
        $region16: #{tpu_custom_call.1} parent=11 // pred_fallthru
          _
        // Predicated region
        $region17: #{tpu_custom_call.1} parent=11 // pred_check
          %p340 = pneg %p105
        $region18: #{tpu_custom_call.1} parent=11 // pred_check_branch
          %342 = sbr.rel (%p340) target = $region20
        $region19: #{tpu_custom_call.1} parent=11 // pred_region
          _
        $region20: #{tpu_custom_call.1} parent=11 // pred_fallthru
          _
        // Predicated region
        $region21: #{tpu_custom_call.1} parent=11 // pred_check
          %p343 = pneg %p126
        $region22: #{tpu_custom_call.1} parent=11 // pred_check_branch
          %345 = sbr.rel (%p343) target = $region24
        $region23: #{tpu_custom_call.1} parent=11 // pred_region
          _
        $region24: #{tpu_custom_call.1} parent=11 // pred_fallthru
          _
        // Predicated region
        $region25: #{tpu_custom_call.1} parent=11 // pred_check
          %p346 = pneg %p147
        $region26: #{tpu_custom_call.1} parent=11 // pred_check_branch
          %348 = sbr.rel (%p346) target = $region28
        $region27: #{tpu_custom_call.1} parent=11 // pred_region
          _
        $region28: #{tpu_custom_call.1} parent=11 // pred_fallthru
          _
        // Predicated region
        $region29: #{tpu_custom_call.1} parent=11 // pred_check
          %p349 = pneg %p168
        $region30: #{tpu_custom_call.1} parent=11 // pred_check_branch
          %351 = sbr.rel (%p349) target = $region32
        $region31: #{tpu_custom_call.1} parent=11 // pred_region
          _
        $region32: #{tpu_custom_call.1} parent=11 // pred_fallthru
          _
        // Predicated region
        $region33: #{tpu_custom_call.1} parent=11 // pred_check
          %p352 = pneg %p189
        $region34: #{tpu_custom_call.1} parent=11 // pred_check_branch
          %354 = sbr.rel (%p352) target = $region36
        $region35: #{tpu_custom_call.1} parent=11 // pred_region
          _
        $region36: #{tpu_custom_call.1} parent=11 // pred_fallthru
          _
        // Predicated region
        $region37: #{tpu_custom_call.1} parent=11 // pred_check
          %p355 = pneg %p210
        $region38: #{tpu_custom_call.1} parent=11 // pred_check_branch
          %357 = sbr.rel (%p355) target = $region40
        $region39: #{tpu_custom_call.1} parent=11 // pred_region
          _
        $region40: #{tpu_custom_call.1} parent=11 // pred_fallthru
          _
        // Predicated region
        $region41: #{tpu_custom_call.1} parent=11 // pred_check
          %p358 = pneg %p231
        $region42: #{tpu_custom_call.1} parent=11 // pred_check_branch
          %360 = sbr.rel (%p358) target = $region44
        $region43: #{tpu_custom_call.1} parent=11 // pred_region
          _
        $region44: #{tpu_custom_call.1} parent=11 // pred_fallthru
          _
        // Predicated region
        $region45: #{tpu_custom_call.1} parent=11 // pred_check
          %p361 = pneg %p252
        $region46: #{tpu_custom_call.1} parent=11 // pred_check_branch
          %363 = sbr.rel (%p361) target = $region48
        $region47: #{tpu_custom_call.1} parent=11 // pred_region
          _
        $region48: #{tpu_custom_call.1} parent=11 // pred_fallthru
          _
        // Predicated region
        $region49: #{tpu_custom_call.1} parent=11 // pred_check
          %p364 = pneg %p273
        $region50: #{tpu_custom_call.1} parent=11 // pred_check_branch
          %366 = sbr.rel (%p364) target = $region52
        $region51: #{tpu_custom_call.1} parent=11 // pred_region
          _
        $region52: #{tpu_custom_call.1} parent=11 // pred_fallthru
          _
        // Predicated region
        $region53: #{tpu_custom_call.1} parent=11 // pred_check
          %p367 = pneg %p294
        $region54: #{tpu_custom_call.1} parent=11 // pred_check_branch
          %369 = sbr.rel (%p367) target = $region56
        $region55: #{tpu_custom_call.1} parent=11 // pred_region
          _
        $region56: #{tpu_custom_call.1} parent=11 // pred_fallthru
          _
      $region12: #{tpu_custom_call.1} parent=5 // pred_fallthru
        _
      %p370 = scmp.lt.s32.totalorder %s23, 2
      // Predicated region
      $region57: #{tpu_custom_call.1} parent=5 // pred_check
        %p371 = pneg %p370
      $region58: #{tpu_custom_call.1} parent=5 // pred_check_branch
        %373 = sbr.rel (%p371) target = $region60
      $region59: #{tpu_custom_call.1} parent=5 // pred_region
        // Predicated region
        $region61: #{tpu_custom_call.1} parent=59 // pred_check
          %p374 = pneg %p57
        $region62: #{tpu_custom_call.1} parent=59 // pred_check_branch
          %376 = sbr.rel (%p374) target = $region64
        $region63: #{tpu_custom_call.1} parent=59 // pred_region
          %s377 = smul.u32 2, %s31
          %p378 = scmp.lt.s32.totalorder %s30, 1
          %s379 = scalar_select %p378, %s30, 1
          %p380 = scmp.lt.s32.totalorder %s377, 1
          %s381 = scalar_select %p380, %s377, 1
          %s382 = smul.addr %s379, 4
          %s383 = sadd.s32 %s381, %s382
          %s384 = smul.addr %s383, 8
          %s385 = scalar_lea.vmem %s0, %s384
          %s386 = smul.u32 2, %s31
        $region64: #{tpu_custom_call.1} parent=59 // pred_fallthru
          _
      $region60: #{tpu_custom_call.1} parent=5 // pred_fallthru
        _
      %p387 = scmp.le.s32.totalorder 1, %s23
      %p388 = scmp.lt.s32.totalorder %s23, 3
      %p389 = pnand %p387, %p388
      %p390 = pneg %p389
      // Predicated region
      $region65: #{tpu_custom_call.1} parent=5 // pred_check
        _
      $region66: #{tpu_custom_call.1} parent=5 // pred_check_branch
        %392 = sbr.rel (%p389) target = $region68
      $region67: #{tpu_custom_call.1} parent=5 // pred_region
        %s393 = ssub.s32 %s23, 1
        %s394 = smul.u32 2, %s33
        %p395 = scmp.lt.s32.totalorder %s32, 1
        %s396 = scalar_select %p395, %s32, 1
        %p397 = scmp.lt.s32.totalorder %s394, 1
        %s398 = scalar_select %p397, %s394, 1
        %s399 = smul.addr %s396, 4
        %s400 = sadd.s32 %s398, %s399
        %s401 = smul.addr %s400, 8
        %s402 = scalar_lea.vmem %s0, %s401
        %p403 = pneg %p63
        %p404 = pneg %p60
        %p405 = pneg %p84
        %p406 = pneg %p81
        %p407 = pneg %p105
        %p408 = pneg %p102
        %p409 = pneg %p126
        %p410 = pneg %p123
        %p411 = pneg %p147
        %p412 = pneg %p144
        %p413 = pneg %p168
        %p414 = pneg %p165
        %p415 = pneg %p189
        %p416 = pneg %p186
        %p417 = pneg %p210
        %p418 = pneg %p207
        %p419 = pneg %p231
        %p420 = pneg %p228
        %p421 = pneg %p252
        %p422 = pneg %p249
        %p423 = pneg %p273
        %p424 = pneg %p270
        %p425 = pneg %p294
        %p426 = pneg %p291
        %p427 = pneg %p322
        %p428 = pneg %p319
        %s429 = sand.u32 %s309, 1
        %s430 = scalar_lea.sflag [#allocation4], %s429
        %s431 = sand.u32 %s309, 1
        %s432 = smul.addr %s431, 2
        %s433 = scalar_lea.vmem [#allocation3], %s432
        %s434 = smul.u32 2, %s33
        %p435 = scmp.lt.s32.totalorder %s32, 1
        %s436 = scalar_select %p435, %s32, 1
        %p437 = scmp.lt.s32.totalorder %s434, 1
        %s438 = scalar_select %p437, %s434, 1
        %s439 = smul.addr %s436, 4
        %s440 = sadd.s32 %s438, %s439
        %s441 = smul.addr %s440, 8
        %s442 = scalar_lea.vmem %s0, %s441
        %s443 = smul.u32 2, %s33
        %s444 = smul.u32 2, %s33
        %v445 = vld [vmem:[%s442] sm:$0xff]
        %v446 = vld [vmem:[%s442 + $0x8] sm:$0xff]
        %v447 = vld [vmem:[%s442 + $0x10] sm:$0xff]
        %v448 = vld [vmem:[%s442 + $0x18] sm:$0xff]
        %v449 = vld [vmem:[%s1] sm:$0xff]
        %v450 = vld [vmem:[%s1 + $0x8] sm:$0xff]
        %v451 = vld [vmem:[%s1 + $0x10] sm:$0xff]
        %v452 = vld [vmem:[%s1 + $0x18] sm:$0xff]
        %v453 = vld [vmem:[%s2] sm:$0xff]
        %v454 = vld [vmem:[%s2 + $0x8] sm:$0xff]
        %v455 = vld [vmem:[%s2 + $0x10] sm:$0xff]
        %v456 = vld [vmem:[%s2 + $0x18] sm:$0xff]
        %458 = vset.pattern.permute.xlu0 0
        %459 = vperm.xlu0 %458, %v453
        %v460 = vpop.permute.xlu0 %459
        %463 = vset.pattern.permute.xlu0 0
        %464 = vperm.xlu0 %463, %v454
        %v465 = vpop.permute.xlu0 %464
        %468 = vset.pattern.permute.xlu0 0
        %469 = vperm.xlu0 %468, %v455
        %v470 = vpop.permute.xlu0 %469
        %473 = vset.pattern.permute.xlu0 0
        %474 = vperm.xlu0 %473, %v456
        %v475 = vpop.permute.xlu0 %474
        %vm477 = vcmask 130048
        %v479 = vsel %vm477, %v449, 0
        %v482 = vsel %vm477, %v450, 0
        %v485 = vsel %vm477, %v451, 0
        %v488 = vsel %vm477, %v452, 0
        %490 = vmatpush.msra.mxu0 0.0
        %491 = vmatpush.msra.mxu0 0.0
        %492 = vmatpush.msra.mxu0 0.0
        %493 = vmatpush.msra.mxu0 0.0
        %494 = vmatpush.msra.mxu0 0.0
        %495 = vmatpush.msra.mxu0 0.0
        %496 = vmatpush.msra.mxu0 0.0
        %497 = vmatpush.msra.mxu0 0.0
        %498 = vmatpush.msra.mxu0 0.0
        %499 = vmatpush.msra.mxu0 0.0
        %500 = vmatpush.msra.mxu0 0.0
        %501 = vmatpush.msra.mxu0 0.0
        %502 = vmatpush.msra.mxu0 0.0
        %503 = vmatpush.msra.mxu0 0.0
        %504 = vmatpush.msra.mxu0 %v447
        %505 = vmatpush.msra.mxu0 %v445
        %506 = vmatmul.f32.gmra.mxu0 %v479
        %v507 = vpop.f32.mrf.mxu0
        %v508 = vadd.f32 %v460, %v507
        %509 = vmatmul.f32.gmra.mxu0 %v482
        %v510 = vpop.f32.mrf.mxu0
        %v511 = vadd.f32 %v465, %v510
        %512 = vmatmul.f32.gmra.mxu0 %v485
        %v513 = vpop.f32.mrf.mxu0
        %v514 = vadd.f32 %v470, %v513
        %515 = vmatmul.f32.gmra.mxu0 %v488
        %v516 = vpop.f32.mrf.mxu0
        %v517 = vadd.f32 %v475, %v516
        %518 = vdwg.mxu0
        %519 = vmatpush.msra.mxu0 0.0
        %520 = vmatpush.msra.mxu0 0.0
        %521 = vmatpush.msra.mxu0 0.0
        %522 = vmatpush.msra.mxu0 0.0
        %523 = vmatpush.msra.mxu0 0.0
        %524 = vmatpush.msra.mxu0 0.0
        %525 = vmatpush.msra.mxu0 0.0
        %526 = vmatpush.msra.mxu0 0.0
        %527 = vmatpush.msra.mxu0 0.0
        %528 = vmatpush.msra.mxu0 0.0
        %529 = vmatpush.msra.mxu0 0.0
        %530 = vmatpush.msra.mxu0 0.0
        %531 = vmatpush.msra.mxu0 0.0
        %532 = vmatpush.msra.mxu0 0.0
        %533 = vmatpush.msra.mxu0 %v448
        %534 = vmatpush.msra.mxu0 %v446
        %535 = vmatmul.f32.gmra.mxu0 %v479
        %v536 = vpop.f32.mrf.mxu0
        %v537 = vadd.f32 %v460, %v536
        %538 = vmatmul.f32.gmra.mxu0 %v482
        %v539 = vpop.f32.mrf.mxu0
        %v540 = vadd.f32 %v465, %v539
        %541 = vmatmul.f32.gmra.mxu0 %v485
        %v542 = vpop.f32.mrf.mxu0
        %v543 = vadd.f32 %v470, %v542
        %544 = vmatmul.f32.gmra.mxu0 %v488
        %v545 = vpop.f32.mrf.mxu0
        %v546 = vadd.f32 %v475, %v545
        %547 = vdwg.mxu0
        %vm548 = vcmp.gt.f32.partialorder %v508, 0.0
        %vm549 = vcmp.gt.f32.partialorder %v537, 0.0
        %vm550 = vcmp.gt.f32.partialorder %v511, 0.0
        %vm551 = vcmp.gt.f32.partialorder %v540, 0.0
        %vm552 = vcmp.gt.f32.partialorder %v514, 0.0
        %vm553 = vcmp.gt.f32.partialorder %v543, 0.0
        %vm554 = vcmp.gt.f32.partialorder %v517, 0.0
        %vm555 = vcmp.gt.f32.partialorder %v546, 0.0
        %v556 = vmul.f32 %v508, 0.01
        %v557 = vmul.f32 %v537, 0.01
        %v558 = vmul.f32 %v511, 0.01
        %v559 = vmul.f32 %v540, 0.01
        %v560 = vmul.f32 %v514, 0.01
        %v561 = vmul.f32 %v543, 0.01
        %v562 = vmul.f32 %v517, 0.01
        %v563 = vmul.f32 %v546, 0.01
        %v564 = vsel %vm548, %v508, %v556
        %v565 = vsel %vm549, %v537, %v557
        %v566 = vsel %vm550, %v511, %v558
        %v567 = vsel %vm551, %v540, %v559
        %v568 = vsel %vm552, %v514, %v560
        %v569 = vsel %vm553, %v543, %v561
        %v570 = vsel %vm554, %v517, %v562
        %v571 = vsel %vm555, %v546, %v563
        %v572 = vld [vmem:[%s3] sm:$0xff]
        %v573 = vld [vmem:[%s3 + $0x8] sm:$0xff]
        %v574 = vld [vmem:[%s3 + $0x10] sm:$0xff]
        %v575 = vld [vmem:[%s3 + $0x18] sm:$0xff]
        %v576 = vld [vmem:[%s4] sm:$0xff]
        %v577 = vld [vmem:[%s4 + $0x8] sm:$0xff]
        %v578 = vld [vmem:[%s4 + $0x10] sm:$0xff]
        %v579 = vld [vmem:[%s4 + $0x18] sm:$0xff]
        %v580 = vld [vmem:[%s5] sm:$0xff]
        %v581 = vld [vmem:[%s5 + $0x8] sm:$0xff]
        %v582 = vld [vmem:[%s5 + $0x10] sm:$0xff]
        %v583 = vld [vmem:[%s5 + $0x18] sm:$0xff]
        %v585 = vsel %vm477, %v576, 0
        %v588 = vsel %vm477, %v577, 0
        %v591 = vsel %vm477, %v578, 0
        %v594 = vsel %vm477, %v579, 0
        %596 = vmatpush.msra.mxu0 0.0
        %597 = vmatpush.msra.mxu0 0.0
        %598 = vmatpush.msra.mxu0 0.0
        %599 = vmatpush.msra.mxu0 0.0
        %600 = vmatpush.msra.mxu0 0.0
        %601 = vmatpush.msra.mxu0 0.0
        %602 = vmatpush.msra.mxu0 0.0
        %603 = vmatpush.msra.mxu0 0.0
        %604 = vmatpush.msra.mxu0 0.0
        %605 = vmatpush.msra.mxu0 0.0
        %606 = vmatpush.msra.mxu0 0.0
        %607 = vmatpush.msra.mxu0 0.0
        %608 = vmatpush.msra.mxu0 0.0
        %609 = vmatpush.msra.mxu0 0.0
        %610 = vmatpush.msra.mxu0 %v447
        %611 = vmatpush.msra.mxu0 %v445
        %612 = vmatmul.f32.gmra.mxu0 %v585
        %v613 = vpop.f32.mrf.mxu0
        %v614 = vadd.f32 0.0, %v613
        %615 = vmatmul.f32.gmra.mxu0 %v588
        %v616 = vpop.f32.mrf.mxu0
        %v617 = vadd.f32 0.0, %v616
        %618 = vmatmul.f32.gmra.mxu0 %v591
        %v619 = vpop.f32.mrf.mxu0
        %v620 = vadd.f32 0.0, %v619
        %621 = vmatmul.f32.gmra.mxu0 %v594
        %v622 = vpop.f32.mrf.mxu0
        %v623 = vadd.f32 0.0, %v622
        %624 = vdwg.mxu0
        %625 = vmatpush.msra.mxu0 0.0
        %626 = vmatpush.msra.mxu0 0.0
        %627 = vmatpush.msra.mxu0 0.0
        %628 = vmatpush.msra.mxu0 0.0
        %629 = vmatpush.msra.mxu0 0.0
        %630 = vmatpush.msra.mxu0 0.0
        %631 = vmatpush.msra.mxu0 0.0
        %632 = vmatpush.msra.mxu0 0.0
        %633 = vmatpush.msra.mxu0 0.0
        %634 = vmatpush.msra.mxu0 0.0
        %635 = vmatpush.msra.mxu0 0.0
        %636 = vmatpush.msra.mxu0 0.0
        %637 = vmatpush.msra.mxu0 0.0
        %638 = vmatpush.msra.mxu0 0.0
        %639 = vmatpush.msra.mxu0 %v448
        %640 = vmatpush.msra.mxu0 %v446
        %641 = vmatmul.f32.gmra.mxu0 %v585
        %v642 = vpop.f32.mrf.mxu0
        %v643 = vadd.f32 0.0, %v642
        %644 = vmatmul.f32.gmra.mxu0 %v588
        %v645 = vpop.f32.mrf.mxu0
        %v646 = vadd.f32 0.0, %v645
        %647 = vmatmul.f32.gmra.mxu0 %v591
        %v648 = vpop.f32.mrf.mxu0
        %v649 = vadd.f32 0.0, %v648
        %650 = vmatmul.f32.gmra.mxu0 %v594
        %v651 = vpop.f32.mrf.mxu0
        %v652 = vadd.f32 0.0, %v651
        %653 = vdwg.mxu0
        %vm654 = vcmask 261120
        %v656 = vsel %vm654, %v572, 0
        %v659 = vsel %vm654, %v573, 0
        %v662 = vsel %vm654, %v574, 0
        %v665 = vsel %vm654, %v575, 0
        %667 = vmatpush.msra.mxu0 0.0
        %668 = vmatpush.msra.mxu0 0.0
        %669 = vmatpush.msra.mxu0 0.0
        %670 = vmatpush.msra.mxu0 0.0
        %671 = vmatpush.msra.mxu0 0.0
        %672 = vmatpush.msra.mxu0 0.0
        %673 = vmatpush.msra.mxu0 0.0
        %674 = vmatpush.msra.mxu0 0.0
        %675 = vmatpush.msra.mxu0 0.0
        %676 = vmatpush.msra.mxu0 0.0
        %677 = vmatpush.msra.mxu0 0.0
        %678 = vmatpush.msra.mxu0 0.0
        %679 = vmatpush.msra.mxu0 %v570
        %680 = vmatpush.msra.mxu0 %v568
        %681 = vmatpush.msra.mxu0 %v566
        %682 = vmatpush.msra.mxu0 %v564
        %683 = vmatmul.f32.gmra.mxu0 %v656
        %v684 = vpop.f32.mrf.mxu0
        %v685 = vadd.f32 %v614, %v684
        %686 = vmatmul.f32.gmra.mxu0 %v659
        %v687 = vpop.f32.mrf.mxu0
        %v688 = vadd.f32 %v617, %v687
        %689 = vmatmul.f32.gmra.mxu0 %v662
        %v690 = vpop.f32.mrf.mxu0
        %v691 = vadd.f32 %v620, %v690
        %692 = vmatmul.f32.gmra.mxu0 %v665
        %v693 = vpop.f32.mrf.mxu0
        %v694 = vadd.f32 %v623, %v693
        %695 = vdwg.mxu0
        %696 = vmatpush.msra.mxu0 0.0
        %697 = vmatpush.msra.mxu0 0.0
        %698 = vmatpush.msra.mxu0 0.0
        %699 = vmatpush.msra.mxu0 0.0
        %700 = vmatpush.msra.mxu0 0.0
        %701 = vmatpush.msra.mxu0 0.0
        %702 = vmatpush.msra.mxu0 0.0
        %703 = vmatpush.msra.mxu0 0.0
        %704 = vmatpush.msra.mxu0 0.0
        %705 = vmatpush.msra.mxu0 0.0
        %706 = vmatpush.msra.mxu0 0.0
        %707 = vmatpush.msra.mxu0 0.0
        %708 = vmatpush.msra.mxu0 %v571
        %709 = vmatpush.msra.mxu0 %v569
        %710 = vmatpush.msra.mxu0 %v567
        %711 = vmatpush.msra.mxu0 %v565
        %712 = vmatmul.f32.gmra.mxu0 %v656
        %v713 = vpop.f32.mrf.mxu0
        %v714 = vadd.f32 %v643, %v713
        %715 = vmatmul.f32.gmra.mxu0 %v659
        %v716 = vpop.f32.mrf.mxu0
        %v717 = vadd.f32 %v646, %v716
        %718 = vmatmul.f32.gmra.mxu0 %v662
        %v719 = vpop.f32.mrf.mxu0
        %v720 = vadd.f32 %v649, %v719
        %721 = vmatmul.f32.gmra.mxu0 %v665
        %v722 = vpop.f32.mrf.mxu0
        %v723 = vadd.f32 %v652, %v722
        %724 = vdwg.mxu0
        %726 = vset.pattern.permute.xlu0 0
        %727 = vperm.xlu0 %726, %v580
        %v728 = vpop.permute.xlu0 %727
        %731 = vset.pattern.permute.xlu0 0
        %732 = vperm.xlu0 %731, %v581
        %v733 = vpop.permute.xlu0 %732
        %736 = vset.pattern.permute.xlu0 0
        %737 = vperm.xlu0 %736, %v582
        %v738 = vpop.permute.xlu0 %737
        %741 = vset.pattern.permute.xlu0 0
        %742 = vperm.xlu0 %741, %v583
        %v743 = vpop.permute.xlu0 %742
        %v745 = vadd.f32 %v685, %v728
        %v746 = vadd.f32 %v714, %v728
        %v747 = vadd.f32 %v688, %v733
        %v748 = vadd.f32 %v717, %v733
        %v749 = vadd.f32 %v691, %v738
        %v750 = vadd.f32 %v720, %v738
        %v751 = vadd.f32 %v694, %v743
        %v752 = vadd.f32 %v723, %v743
        %vm753 = vcmp.gt.f32.partialorder %v745, 0.0
        %vm754 = vcmp.gt.f32.partialorder %v746, 0.0
        %vm755 = vcmp.gt.f32.partialorder %v747, 0.0
        %vm756 = vcmp.gt.f32.partialorder %v748, 0.0
        %vm757 = vcmp.gt.f32.partialorder %v749, 0.0
        %vm758 = vcmp.gt.f32.partialorder %v750, 0.0
        %vm759 = vcmp.gt.f32.partialorder %v751, 0.0
        %vm760 = vcmp.gt.f32.partialorder %v752, 0.0
        %v761 = vmul.f32 %v745, 0.01
        %v762 = vmul.f32 %v746, 0.01
        %v763 = vmul.f32 %v747, 0.01
        %v764 = vmul.f32 %v748, 0.01
        %v765 = vmul.f32 %v749, 0.01
        %v766 = vmul.f32 %v750, 0.01
        %v767 = vmul.f32 %v751, 0.01
        %v768 = vmul.f32 %v752, 0.01
        %v769 = vsel %vm753, %v745, %v761
        %v770 = vsel %vm754, %v746, %v762
        %v771 = vsel %vm755, %v747, %v763
        %v772 = vsel %vm756, %v748, %v764
        %v773 = vsel %vm757, %v749, %v765
        %v774 = vsel %vm758, %v750, %v766
        %v775 = vsel %vm759, %v751, %v767
        %v776 = vsel %vm760, %v752, %v768
        %v777 = vld [vmem:[%s6] sm:$0xff]
        %v778 = vld [vmem:[%s6 + $0x8] sm:$0xff]
        %v779 = vld [vmem:[%s7] sm:$0xff]
        %v780 = vld [vmem:[%s7 + $0x8] sm:$0xff]
        %v781 = vld [vmem:[%s8] sm:$0xff]
        %v782 = vld [vmem:[%s8 + $0x8] sm:$0xff]
        %v784 = vsel %vm477, %v779, 0
        %v787 = vsel %vm477, %v780, 0
        %789 = vmatpush.msra.mxu0 0.0
        %790 = vmatpush.msra.mxu0 0.0
        %791 = vmatpush.msra.mxu0 0.0
        %792 = vmatpush.msra.mxu0 0.0
        %793 = vmatpush.msra.mxu0 0.0
        %794 = vmatpush.msra.mxu0 0.0
        %795 = vmatpush.msra.mxu0 0.0
        %796 = vmatpush.msra.mxu0 0.0
        %797 = vmatpush.msra.mxu0 0.0
        %798 = vmatpush.msra.mxu0 0.0
        %799 = vmatpush.msra.mxu0 0.0
        %800 = vmatpush.msra.mxu0 0.0
        %801 = vmatpush.msra.mxu0 0.0
        %802 = vmatpush.msra.mxu0 0.0
        %803 = vmatpush.msra.mxu0 %v447
        %804 = vmatpush.msra.mxu0 %v445
        %805 = vmatmul.f32.gmra.mxu0 %v784
        %v806 = vpop.f32.mrf.mxu0
        %v807 = vadd.f32 0.0, %v806
        %808 = vmatmul.f32.gmra.mxu0 %v787
        %v809 = vpop.f32.mrf.mxu0
        %v810 = vadd.f32 0.0, %v809
        %811 = vdwg.mxu0
        %812 = vmatpush.msra.mxu0 0.0
        %813 = vmatpush.msra.mxu0 0.0
        %814 = vmatpush.msra.mxu0 0.0
        %815 = vmatpush.msra.mxu0 0.0
        %816 = vmatpush.msra.mxu0 0.0
        %817 = vmatpush.msra.mxu0 0.0
        %818 = vmatpush.msra.mxu0 0.0
        %819 = vmatpush.msra.mxu0 0.0
        %820 = vmatpush.msra.mxu0 0.0
        %821 = vmatpush.msra.mxu0 0.0
        %822 = vmatpush.msra.mxu0 0.0
        %823 = vmatpush.msra.mxu0 0.0
        %824 = vmatpush.msra.mxu0 0.0
        %825 = vmatpush.msra.mxu0 0.0
        %826 = vmatpush.msra.mxu0 %v448
        %827 = vmatpush.msra.mxu0 %v446
        %828 = vmatmul.f32.gmra.mxu0 %v784
        %v829 = vpop.f32.mrf.mxu0
        %v830 = vadd.f32 0.0, %v829
        %831 = vmatmul.f32.gmra.mxu0 %v787
        %v832 = vpop.f32.mrf.mxu0
        %v833 = vadd.f32 0.0, %v832
        %834 = vdwg.mxu0
        %v836 = vsel %vm654, %v777, 0
        %v839 = vsel %vm654, %v778, 0
        %841 = vmatpush.msra.mxu0 0.0
        %842 = vmatpush.msra.mxu0 0.0
        %843 = vmatpush.msra.mxu0 0.0
        %844 = vmatpush.msra.mxu0 0.0
        %845 = vmatpush.msra.mxu0 0.0
        %846 = vmatpush.msra.mxu0 0.0
        %847 = vmatpush.msra.mxu0 0.0
        %848 = vmatpush.msra.mxu0 0.0
        %849 = vmatpush.msra.mxu0 0.0
        %850 = vmatpush.msra.mxu0 0.0
        %851 = vmatpush.msra.mxu0 0.0
        %852 = vmatpush.msra.mxu0 0.0
        %853 = vmatpush.msra.mxu0 %v775
        %854 = vmatpush.msra.mxu0 %v773
        %855 = vmatpush.msra.mxu0 %v771
        %856 = vmatpush.msra.mxu0 %v769
        %857 = vmatmul.f32.gmra.mxu0 %v836
        %v858 = vpop.f32.mrf.mxu0
        %v859 = vadd.f32 %v807, %v858
        %860 = vmatmul.f32.gmra.mxu0 %v839
        %v861 = vpop.f32.mrf.mxu0
        %v862 = vadd.f32 %v810, %v861
        %863 = vdwg.mxu0
        %864 = vmatpush.msra.mxu0 0.0
        %865 = vmatpush.msra.mxu0 0.0
        %866 = vmatpush.msra.mxu0 0.0
        %867 = vmatpush.msra.mxu0 0.0
        %868 = vmatpush.msra.mxu0 0.0
        %869 = vmatpush.msra.mxu0 0.0
        %870 = vmatpush.msra.mxu0 0.0
        %871 = vmatpush.msra.mxu0 0.0
        %872 = vmatpush.msra.mxu0 0.0
        %873 = vmatpush.msra.mxu0 0.0
        %874 = vmatpush.msra.mxu0 0.0
        %875 = vmatpush.msra.mxu0 0.0
        %876 = vmatpush.msra.mxu0 %v776
        %877 = vmatpush.msra.mxu0 %v774
        %878 = vmatpush.msra.mxu0 %v772
        %879 = vmatpush.msra.mxu0 %v770
        %880 = vmatmul.f32.gmra.mxu0 %v836
        %v881 = vpop.f32.mrf.mxu0
        %v882 = vadd.f32 %v830, %v881
        %883 = vmatmul.f32.gmra.mxu0 %v839
        %v884 = vpop.f32.mrf.mxu0
        %v885 = vadd.f32 %v833, %v884
        %886 = vdwg.mxu0
        %888 = vset.pattern.permute.xlu0 0
        %889 = vperm.xlu0 %888, %v781
        %v890 = vpop.permute.xlu0 %889
        %893 = vset.pattern.permute.xlu0 0
        %894 = vperm.xlu0 %893, %v782
        %v895 = vpop.permute.xlu0 %894
        %v897 = vadd.f32 %v859, %v890
        %v898 = vadd.f32 %v882, %v890
        %v899 = vadd.f32 %v862, %v895
        %v900 = vadd.f32 %v885, %v895
        %vm901 = vcmp.gt.f32.partialorder %v897, 0.0
        %vm902 = vcmp.gt.f32.partialorder %v898, 0.0
        %vm903 = vcmp.gt.f32.partialorder %v899, 0.0
        %vm904 = vcmp.gt.f32.partialorder %v900, 0.0
        %v905 = vmul.f32 %v897, 0.01
        %v906 = vmul.f32 %v898, 0.01
        %v907 = vmul.f32 %v899, 0.01
        %v908 = vmul.f32 %v900, 0.01
        %v909 = vsel %vm901, %v897, %v905
        %v910 = vsel %vm902, %v898, %v906
        %v911 = vsel %vm903, %v899, %v907
        %v912 = vsel %vm904, %v900, %v908
        %v913 = vld [vmem:[%s9] sm:$0x1]
        %v914 = vld [vmem:[%s10] sm:$0x1]
        %v915 = vld [vmem:[#allocation2] sm:$0x1]
        %v917 = vsel %vm477, %v914, 0
        %919 = vmatpush.msra.mxu0 0.0
        %920 = vmatpush.msra.mxu0 0.0
        %921 = vmatpush.msra.mxu0 0.0
        %922 = vmatpush.msra.mxu0 0.0
        %923 = vmatpush.msra.mxu0 0.0
        %924 = vmatpush.msra.mxu0 0.0
        %925 = vmatpush.msra.mxu0 0.0
        %926 = vmatpush.msra.mxu0 0.0
        %927 = vmatpush.msra.mxu0 0.0
        %928 = vmatpush.msra.mxu0 0.0
        %929 = vmatpush.msra.mxu0 0.0
        %930 = vmatpush.msra.mxu0 0.0
        %931 = vmatpush.msra.mxu0 0.0
        %932 = vmatpush.msra.mxu0 0.0
        %933 = vmatpush.msra.mxu0 %v447
        %934 = vmatpush.msra.mxu0 %v445
        %935 = vmatmul.f32.gmra.mxu0 %v917
        %v936 = vpop.f32.mrf.mxu0
        %v937 = vadd.f32 0.0, %v936
        %938 = vdwg.mxu0
        %939 = vmatpush.msra.mxu0 0.0
        %940 = vmatpush.msra.mxu0 0.0
        %941 = vmatpush.msra.mxu0 0.0
        %942 = vmatpush.msra.mxu0 0.0
        %943 = vmatpush.msra.mxu0 0.0
        %944 = vmatpush.msra.mxu0 0.0
        %945 = vmatpush.msra.mxu0 0.0
        %946 = vmatpush.msra.mxu0 0.0
        %947 = vmatpush.msra.mxu0 0.0
        %948 = vmatpush.msra.mxu0 0.0
        %949 = vmatpush.msra.mxu0 0.0
        %950 = vmatpush.msra.mxu0 0.0
        %951 = vmatpush.msra.mxu0 0.0
        %952 = vmatpush.msra.mxu0 0.0
        %953 = vmatpush.msra.mxu0 %v448
        %954 = vmatpush.msra.mxu0 %v446
        %955 = vmatmul.f32.gmra.mxu0 %v917
        %v956 = vpop.f32.mrf.mxu0
        %v957 = vadd.f32 0.0, %v956
        %958 = vdwg.mxu0
        %v960 = vsel %vm477, %v913, 0
        %962 = vmatpush.msra.mxu0 0.0
        %963 = vmatpush.msra.mxu0 0.0
        %964 = vmatpush.msra.mxu0 0.0
        %965 = vmatpush.msra.mxu0 0.0
        %966 = vmatpush.msra.mxu0 0.0
        %967 = vmatpush.msra.mxu0 0.0
        %968 = vmatpush.msra.mxu0 0.0
        %969 = vmatpush.msra.mxu0 0.0
        %970 = vmatpush.msra.mxu0 0.0
        %971 = vmatpush.msra.mxu0 0.0
        %972 = vmatpush.msra.mxu0 0.0
        %973 = vmatpush.msra.mxu0 0.0
        %974 = vmatpush.msra.mxu0 0.0
        %975 = vmatpush.msra.mxu0 0.0
        %976 = vmatpush.msra.mxu0 %v911
        %977 = vmatpush.msra.mxu0 %v909
        %978 = vmatmul.f32.gmra.mxu0 %v960
        %v979 = vpop.f32.mrf.mxu0
        %v980 = vadd.f32 %v937, %v979
        %981 = vdwg.mxu0
        %982 = vmatpush.msra.mxu0 0.0
        %983 = vmatpush.msra.mxu0 0.0
        %984 = vmatpush.msra.mxu0 0.0
        %985 = vmatpush.msra.mxu0 0.0
        %986 = vmatpush.msra.mxu0 0.0
        %987 = vmatpush.msra.mxu0 0.0
        %988 = vmatpush.msra.mxu0 0.0
        %989 = vmatpush.msra.mxu0 0.0
        %990 = vmatpush.msra.mxu0 0.0
        %991 = vmatpush.msra.mxu0 0.0
        %992 = vmatpush.msra.mxu0 0.0
        %993 = vmatpush.msra.mxu0 0.0
        %994 = vmatpush.msra.mxu0 0.0
        %995 = vmatpush.msra.mxu0 0.0
        %996 = vmatpush.msra.mxu0 %v912
        %997 = vmatpush.msra.mxu0 %v910
        %998 = vmatmul.f32.gmra.mxu0 %v960
        %v999 = vpop.f32.mrf.mxu0
        %v1000 = vadd.f32 %v957, %v999
        %1001 = vdwg.mxu0
        %1003 = vset.pattern.permute.xlu0 0
        %1004 = vperm.xlu0 %1003, %v915
        %v1005 = vpop.permute.xlu0 %1004
        %v1007 = vperm.slane %v1005, 0
        %v1008 = vadd.f32 %v980, %v1007
        %v1009 = vadd.f32 %v1000, %v1007
        %v1010 = vxor.u32 %v1008, 2147483648
        %v1011 = vxor.u32 %v1009, 2147483648
        %v1012 = vmul.f32 %v1010, 1.442695
        %v1013 = vpow.pop %v1012
        %v1014 = vmul.f32 %v1011, 1.442695
        %v1015 = vpow.pop %v1014
        %v1016 = vadd.f32 %v1013, 1.0
        %v1017 = vadd.f32 %v1015, 1.0
        %v1018 = vrcp.pop %v1016
        %v1019 = vmul.f32 %v1016, %v1018
        %v1020 = vsub.f32 1.0, %v1019
        %v1021 = vmul.f32 %v1018, %v1020
        %v1022 = vadd.f32 %v1018, %v1021
        %vm1023 = vweird.f32 %v1016
        %vm1024 = vweird.f32 %v1018
        %vm1025 = vmor %vm1023, %vm1024
        %v1026 = vsel %vm1025, %v1018, %v1022
        %v1027 = vand.u32 2147483647, %v1016
        %vm1028 = vcmp.eq.f32.partialorder %v1027, 8.507059e+37
        %v1029 = vand.u32 %v1016, 2147483648
        %v1030 = vor.u32 1.1754944e-38, %v1029
        %v1031 = vsel %vm1028, %v1030, %v1026
        %v1032 = vmul.f32 1.0, %v1031
        %v1033 = vrcp.pop %v1017
        %v1034 = vmul.f32 %v1017, %v1033
        %v1035 = vsub.f32 1.0, %v1034
        %v1036 = vmul.f32 %v1033, %v1035
        %v1037 = vadd.f32 %v1033, %v1036
        %vm1038 = vweird.f32 %v1017
        %vm1039 = vweird.f32 %v1033
        %vm1040 = vmor %vm1038, %vm1039
        %v1041 = vsel %vm1040, %v1033, %v1037
        %v1042 = vand.u32 2147483647, %v1017
        %vm1043 = vcmp.eq.f32.partialorder %v1042, 8.507059e+37
        %v1044 = vand.u32 %v1017, 2147483648
        %v1045 = vor.u32 1.1754944e-38, %v1044
        %v1046 = vsel %vm1043, %v1045, %v1041
        %v1047 = vmul.f32 1.0, %v1046
        %v1050 = vrot.slane %v1047, 7
        %vm1051 = vcmask 1040384
        %v1052 = vsel %vm1051, %v1032, %v1050
        %v1054 = vlaneseq
        %vm1055 = vcmp.ge.s32.totalorder %v1054, 0
        %vm1056 = vcmp.lt.s32.totalorder %v1054, 256
        %vm1057 = vmand %vm1055, %vm1056
        %1058 = vst.msk [vmem:[%s433] sm:$0x3] %vm1057, %v1052
        %s1059 = sand.u32 %s309, 1
        %s1060 = scalar_lea.sflag [#allocation4], %s1059
        %s1061 = sand.u32 %s309, 1
        %s1062 = smul.addr %s1061, 2
        %s1063 = scalar_lea.vmem [#allocation3], %s1062
        // Predicated region
        $region69: #{tpu_custom_call.1} parent=67 // pred_check
          %p1064 = pneg %p319
        $region70: #{tpu_custom_call.1} parent=67 // pred_check_branch
          %1066 = sbr.rel (%p1064) target = $region72
        $region71: #{tpu_custom_call.1} parent=67 // pred_region
          %s1067 = smul.u32 2, %s33
          %1069 = vsyncadd %s1060, 0
          %s1070 = smul.addr %s32, 2
          %s1071 = sadd.s32 %s1067, %s1070
          %s1072 = scalar_lea.hbm %s12, %s1071
          %s1074 = sshll.u32 %s1063, 4
          %s1075 = int_to_ptr.vmem [resolvable:$true] %s1074
          %s1076 = sshll.u32 %s1072, 4
          %s1077 = int_to_ptr.hbm [resolvable:$true] %s1076
          %1079 = dma.vmem_to_hbm [thread:$0]  %s1075, 32, %s1077, %s1060
        $region72: #{tpu_custom_call.1} parent=67 // pred_fallthru
          _
      $region68: #{tpu_custom_call.1} parent=5 // pred_fallthru
        _
      %p1080 = scmp.le.s32.totalorder 2, %s23
      // Predicated region
      $region73: #{tpu_custom_call.1} parent=5 // pred_check
        %p1081 = pneg %p1080
      $region74: #{tpu_custom_call.1} parent=5 // pred_check_branch
        %1083 = sbr.rel (%p1081) target = $region76
      $region75: #{tpu_custom_call.1} parent=5 // pred_region
        %s1084 = ssub.s32 %s23, 2
        // Predicated region
        $region77: #{tpu_custom_call.1} parent=75 // pred_check
          %p1085 = pneg %p325
        $region78: #{tpu_custom_call.1} parent=75 // pred_check_branch
          %1087 = sbr.rel (%p1085) target = $region80
        $region79: #{tpu_custom_call.1} parent=75 // pred_region
          %s1088 = sand.u32 %s310, 1
          %s1089 = scalar_lea.sflag [#allocation4], %s1088
          %s1090 = sand.u32 %s310, 1
          %s1091 = smul.addr %s1090, 2
          %s1092 = scalar_lea.vmem [#allocation3], %s1091
          %1094 = dma.done %s1089, 32
        $region80: #{tpu_custom_call.1} parent=75 // pred_fallthru
          _
      $region76: #{tpu_custom_call.1} parent=5 // pred_fallthru
        _
    $region6: #{tpu_custom_call.1} parent=1 // loop_footer
      %s27 = sadd.s32 1, %s23
    $region7: #{tpu_custom_call.1} parent=1 // loop_footer_branch
      %22 = sbr.rel target = $region3
    $region8: #{tpu_custom_call.1} parent=1 // loop_exit
      _
    %1095 = vsyncpa [#allocation4], 1
    %s1096 = scalar_lea.sflag [#allocation4], 1
    %1097 = vsyncpa %s1096, 1

</llo_original>
